<compile_context>
chip_gen: v5e
topology: v5e:2x2
jax: 0.10.0
libtpu: 0.0.40
codegen_flags: <defaults>
</compile_context>

<pallas_src>
import jax
import jax.numpy as jnp
from jax import lax
from jax.experimental import pallas as pl
from jax.experimental.pallas import tpu as pltpu  # noqa: F401  (imported per spec)

MARGIN = 0.3


# --------------------------------------------------------------------------
# Fused kernel:
#   out[0, 0] = CE(cls1, labels) + CE(cls2, labels2)          (mean reduction each)
#   out[0, 1] = KLDiv(log_softmax(cls1), softmax(cls2))       (batchmean)
#   out[0, 2] = batch-hard triplet on concat(feature1, feature2) with labels
#               duplicated, margin=0.3, L2-normalized features.
# --------------------------------------------------------------------------
def _loss_kernel(cls_ref, feat_ref, labcols_ref, labrow_ref, out_ref):
    # cls_ref:     (2, B, C) f32   stacked [cls1; cls2]
    # feat_ref:    (2B, D)  f32    concat [feature1; feature2]
    # labcols_ref: (2B, 2)  int32  col0 = [labels; labels], col1 = [labels2; labels2]
    # labrow_ref:  (1, 2B)  int32  [labels, labels]
    # out_ref:     (1, 128) f32
    cls1 = cls_ref[0].astype(jnp.float32)          # (B, C)
    cls2 = cls_ref[1].astype(jnp.float32)
    B, C = cls1.shape

    labcols = labcols_ref[...]                     # (2B, 2)
    lab_col2 = labcols[:, 0:1]                     # (2B, 1)  [labels; labels]
    lab1 = lab_col2[0:B, :]                        # (B, 1)
    lab2 = labcols[0:B, 1:2]                       # (B, 1)
    lab_row2 = labrow_ref[...]                     # (1, 2B)

    # ---------------- shared softmax pieces (CE + KL) ----------------
    class_iota = lax.broadcasted_iota(jnp.int32, (B, C), 1)
    onehot1 = (lab1 == class_iota).astype(jnp.float32)   # (B, C)
    onehot2 = (lab2 == class_iota).astype(jnp.float32)

    m1 = jnp.max(cls1, axis=1, keepdims=True)      # (B, 1)
    m2 = jnp.max(cls2, axis=1, keepdims=True)
    e1 = jnp.exp(cls1 - m1)                        # (B, C)
    e2 = jnp.exp(cls2 - m2)
    s1 = jnp.sum(e1, axis=1, keepdims=True)        # (B, 1)
    s2 = jnp.sum(e2, axis=1, keepdims=True)
    lse1 = m1 + jnp.log(s1)
    lse2 = m2 + jnp.log(s2)

    # ---------------- CrossEntropy (both heads) ----------------
    picked1 = jnp.sum(onehot1 * cls1, axis=1, keepdims=True)     # (B, 1)
    picked2 = jnp.sum(onehot2 * cls2, axis=1, keepdims=True)
    ce = (jnp.sum(lse1 - picked1, axis=0, keepdims=True) +
          jnp.sum(lse2 - picked2, axis=0, keepdims=True)) * (1.0 / B)   # (1, 1)

    # ---------------- KLDivLoss(batchmean)(log_softmax(cls1), softmax(cls2)) ----
    logp1 = cls1 - lse1
    logp2 = cls2 - lse2
    p2 = e2 * pl.reciprocal(s2, approx=True)       # reuse exp from logsumexp
    kl_rows = jnp.sum(p2 * (logp2 - logp1), axis=1, keepdims=True)      # (B, 1)
    kl = jnp.sum(kl_rows, axis=0, keepdims=True) * (1.0 / B)            # (1, 1)

    # ---------------- Batch-hard triplet (single gram, deferred sqrt) ----------
    f = feat_ref[...].astype(jnp.float32)                          # (2B, D)
    xn = f * lax.rsqrt(jnp.sum(f * f, axis=1, keepdims=True) + 1e-12)
    # one MXU gram: g = xn @ xn.T  (contract on dim 1, no explicit transpose)
    g = lax.dot_general(xn, xn, (((1,), (1,)), ((), ())),
                        preferred_element_type=jnp.float32)        # (2B, 2B)

    pos = lab_col2 == lab_row2                                     # (2B, 2B) bool
    pos_inf = jnp.float32(jnp.inf)
    neg_inf = jnp.float32(-jnp.inf)

    # dist(g) = sqrt(max(2 - 2g, eps)) is monotone-decreasing in g, so reduce on g
    # and apply the sqrt only to the (2B, 1) extrema.
    g_pos_min = jnp.min(jnp.where(pos, g, pos_inf), axis=1, keepdims=True)
    g_neg_max = jnp.max(jnp.where(pos, neg_inf, g), axis=1, keepdims=True)
    d_ap = jnp.sqrt(jnp.maximum(2.0 - 2.0 * g_pos_min, 1e-12))     # (2B, 1)
    d_an = jnp.sqrt(jnp.maximum(2.0 - 2.0 * g_neg_max, 1e-12))

    hinge = jnp.maximum(d_ap - d_an + MARGIN, 0.0)                 # (2B, 1)
    trip = jnp.sum(hinge, axis=0, keepdims=True) * (1.0 / (2 * B))  # (1, 1)

    # ---------------- Lane-dense packed scalar output ----------------
    lane = lax.broadcasted_iota(jnp.int32, (1, 128), 1)
    out_ref[...] = jnp.where(lane == 0, ce,
                   jnp.where(lane == 1, kl,
                   jnp.where(lane == 2, trip, 0.0)))


# --------------------------------------------------------------------------
# Wrapper: single grid-less fused pallas_call (4 input DMAs total)
# --------------------------------------------------------------------------
@jax.jit
def fused_losses(cls1, cls2, labels, labels2, feature1, feature2):
    B, C = cls1.shape
    labels_i = labels.astype(jnp.int32)
    labels2_i = labels2.astype(jnp.int32)

    cls_stacked = jnp.stack([cls1, cls2], axis=0)                     # (2, B, C)
    feat = jnp.concatenate([feature1, feature2], axis=0)              # (2B, D)
    lab_dup = jnp.concatenate([labels_i, labels_i], axis=0)           # (2B,)
    lab2_dup = jnp.concatenate([labels2_i, labels2_i], axis=0)        # (2B,)
    lab_cols = jnp.stack([lab_dup, lab2_dup], axis=1)                 # (2B, 2)
    lab_row = lab_dup.reshape(1, 2 * B)                               # (1, 2B)

    out = pl.pallas_call(
        _loss_kernel,
        out_shape=jax.ShapeDtypeStruct((1, 128), jnp.float32),
    )(cls_stacked, feat, lab_cols, lab_row)
    return out[0, 0], out[0, 1], out[0, 2]


class Opt:
    cls_loss = 'CELoss'
    feature_loss = 'TripletLoss'
    kl_loss = 'KLLoss'
    nclasses = 8
    batchsize = 4
    sample_num = 1


class Loss:
    """JAX/Pallas port of losses/loss.py::Loss.forward (single fused kernel)."""

    def __init__(self, opt):
        self.opt = opt

    def __call__(self, outputs, outputs2, labels, labels2):
        cls1, feature1 = outputs
        cls2, feature2 = outputs2
        # TODO(synk): list-of-heads branches (calc_*_loss isinstance(list)) and the
        # FocalLoss / SameDomain / WeightedSoft / Contrastive feature-loss variants
        # are not exercised by this config; single-tensor heads + CE/Triplet/KL only.
        ce, kl, trip = fused_losses(cls1, cls2, labels, labels2, feature1, feature2)

        zero = jnp.float32(0.0)
        res_cls = ce if self.opt.cls_loss == 'CELoss' else zero
        res_trip = (trip if self.opt.feature_loss in
                    ('TripletLoss', 'HardMiningTripletLoss') else zero)
        res_kl = kl if self.opt.kl_loss == 'KLLoss' else zero

        loss = res_cls + res_trip + res_kl
        return loss, res_cls, res_trip, res_kl


if __name__ == "__main__":
    key = jax.random.PRNGKey(0)
    B, C, D = 4, 8, 32
    k1, k2, k3, k4, k5, k6 = jax.random.split(key, 6)

    cls1 = jax.random.normal(k1, (B, C), jnp.float32)
    cls2 = jax.random.normal(k2, (B, C), jnp.float32)
    feat1 = jax.random.normal(k3, (B, D), jnp.float32)
    feat2 = jax.random.normal(k4, (B, D), jnp.float32)
    labels = jax.random.randint(k5, (B,), 0, C, jnp.int32)
    labels2 = jax.random.randint(k6, (B,), 0, C, jnp.int32)

    opt = Opt()
    opt.nclasses = C
    opt.batchsize = B

    loss_fn = Loss(opt)
    total, cls_l, trip_l, kl_l = loss_fn((cls1, feat1), (cls2, feat2), labels, labels2)
    jax.block_until_ready((total, cls_l, trip_l, kl_l))
    print("KERNEL_OK")
</pallas_src>

<mosaic_0001>
module attributes {stable_mosaic.version = 11 : i64} {
  func.func @_loss_kernel(%arg0: memref<2x4x8xf32, #tpu.memory_space<vmem>>, %arg1: memref<8x32xf32, #tpu.memory_space<vmem>>, %arg2: memref<8x2xi32, #tpu.memory_space<vmem>>, %arg3: memref<1x8xi32, #tpu.memory_space<vmem>>, %arg4: memref<1x128xf32, #tpu.memory_space<vmem>>) attributes {dimension_semantics = [], scalar_prefetch = 0 : i64, scratch_operands = 0 : i64, tpu.core_type = #tpu.core_type<tc>} {
    %c0 = arith.constant 0 : index
    %c0_0 = arith.constant 0 : index
    %c0_1 = arith.constant 0 : index
    %0 = vector.load %arg0[%c0, %c0_0, %c0_1] : memref<2x4x8xf32, #tpu.memory_space<vmem>>, vector<1x4x8xf32>
    %1 = vector.shape_cast %0 : vector<1x4x8xf32> to vector<4x8xf32>
    %c1 = arith.constant 1 : index
    %c0_2 = arith.constant 0 : index
    %c0_3 = arith.constant 0 : index
    %2 = vector.load %arg0[%c1, %c0_2, %c0_3] : memref<2x4x8xf32, #tpu.memory_space<vmem>>, vector<1x4x8xf32>
    %3 = vector.shape_cast %2 : vector<1x4x8xf32> to vector<4x8xf32>
    %c0_4 = arith.constant 0 : index
    %c0_5 = arith.constant 0 : index
    %4 = vector.load %arg2[%c0_4, %c0_5] : memref<8x2xi32, #tpu.memory_space<vmem>>, vector<8x2xi32>
    %5 = vector.extract_strided_slice %4 {offsets = [0, 0], sizes = [8, 1], strides = [1, 1]} : vector<8x2xi32> to vector<8x1xi32>
    %6 = vector.extract_strided_slice %5 {offsets = [0, 0], sizes = [4, 1], strides = [1, 1]} : vector<8x1xi32> to vector<4x1xi32>
    %7 = vector.extract_strided_slice %4 {offsets = [0, 1], sizes = [4, 1], strides = [1, 1]} : vector<8x2xi32> to vector<4x1xi32>
    %c0_6 = arith.constant 0 : index
    %c0_7 = arith.constant 0 : index
    %8 = vector.load %arg3[%c0_6, %c0_7] : memref<1x8xi32, #tpu.memory_space<vmem>>, vector<1x8xi32>
    %9 = tpu.iota {dimensions = array<i32: 1>} : vector<4x8xi32>
    %10 = vector.broadcast %6 : vector<4x1xi32> to vector<4x8xi32>
    %11 = arith.cmpi eq, %10, %9 : vector<4x8xi32>
    %12 = arith.extui %11 : vector<4x8xi1> to vector<4x8xi32>
    %13 = arith.sitofp %12 : vector<4x8xi32> to vector<4x8xf32>
    %14 = vector.broadcast %7 : vector<4x1xi32> to vector<4x8xi32>
    %15 = arith.cmpi eq, %14, %9 : vector<4x8xi32>
    %16 = arith.extui %15 : vector<4x8xi1> to vector<4x8xi32>
    %17 = arith.sitofp %16 : vector<4x8xi32> to vector<4x8xf32>
    %cst = arith.constant dense<0xFF800000> : vector<4xf32>
    %18 = vector.multi_reduction <maximumf>, %1, %cst [1] : vector<4x8xf32> to vector<4xf32>
    %19 = vector.shape_cast %18 : vector<4xf32> to vector<4x1xf32>
    %cst_8 = arith.constant dense<0xFF800000> : vector<4xf32>
    %20 = vector.multi_reduction <maximumf>, %3, %cst_8 [1] : vector<4x8xf32> to vector<4xf32>
    %21 = vector.shape_cast %20 : vector<4xf32> to vector<4x1xf32>
    %22 = vector.broadcast %19 : vector<4x1xf32> to vector<4x8xf32>
    %23 = arith.subf %1, %22 : vector<4x8xf32>
    %24 = math.exp %23 : vector<4x8xf32>
    %25 = vector.broadcast %21 : vector<4x1xf32> to vector<4x8xf32>
    %26 = arith.subf %3, %25 : vector<4x8xf32>
    %27 = math.exp %26 : vector<4x8xf32>
    %cst_9 = arith.constant dense<0.000000e+00> : vector<4xf32>
    %28 = vector.multi_reduction <add>, %24, %cst_9 [1] : vector<4x8xf32> to vector<4xf32>
    %29 = vector.shape_cast %28 : vector<4xf32> to vector<4x1xf32>
    %cst_10 = arith.constant dense<0.000000e+00> : vector<4xf32>
    %30 = vector.multi_reduction <add>, %27, %cst_10 [1] : vector<4x8xf32> to vector<4xf32>
    %31 = vector.shape_cast %30 : vector<4xf32> to vector<4x1xf32>
    %32 = math.log %29 : vector<4x1xf32>
    %33 = arith.addf %19, %32 : vector<4x1xf32>
    %34 = math.log %31 : vector<4x1xf32>
    %35 = arith.addf %21, %34 : vector<4x1xf32>
    %36 = arith.mulf %13, %1 : vector<4x8xf32>
    %cst_11 = arith.constant dense<0.000000e+00> : vector<4xf32>
    %37 = vector.multi_reduction <add>, %36, %cst_11 [1] : vector<4x8xf32> to vector<4xf32>
    %38 = vector.shape_cast %37 : vector<4xf32> to vector<4x1xf32>
    %39 = arith.mulf %17, %3 : vector<4x8xf32>
    %cst_12 = arith.constant dense<0.000000e+00> : vector<4xf32>
    %40 = vector.multi_reduction <add>, %39, %cst_12 [1] : vector<4x8xf32> to vector<4xf32>
    %41 = vector.shape_cast %40 : vector<4xf32> to vector<4x1xf32>
    %42 = arith.subf %33, %38 : vector<4x1xf32>
    %cst_13 = arith.constant dense<0.000000e+00> : vector<1xf32>
    %43 = vector.multi_reduction <add>, %42, %cst_13 [0] : vector<4x1xf32> to vector<1xf32>
    %44 = vector.shape_cast %43 : vector<1xf32> to vector<1x1xf32>
    %45 = arith.subf %35, %41 : vector<4x1xf32>
    %cst_14 = arith.constant dense<0.000000e+00> : vector<1xf32>
    %46 = vector.multi_reduction <add>, %45, %cst_14 [0] : vector<4x1xf32> to vector<1xf32>
    %47 = vector.shape_cast %46 : vector<1xf32> to vector<1x1xf32>
    %48 = arith.addf %44, %47 : vector<1x1xf32>
    %cst_15 = arith.constant 2.500000e-01 : f32
    %49 = vector.broadcast %cst_15 : f32 to vector<1x1xf32>
    %50 = arith.mulf %48, %49 : vector<1x1xf32>
    %51 = vector.broadcast %33 : vector<4x1xf32> to vector<4x8xf32>
    %52 = arith.subf %1, %51 : vector<4x8xf32>
    %53 = vector.broadcast %35 : vector<4x1xf32> to vector<4x8xf32>
    %54 = arith.subf %3, %53 : vector<4x8xf32>
    %55 = tpu.reciprocal %31 {approx = true} : vector<4x1xf32> -> vector<4x1xf32>
    %56 = vector.broadcast %55 : vector<4x1xf32> to vector<4x8xf32>
    %57 = arith.mulf %27, %56 : vector<4x8xf32>
    %58 = arith.subf %54, %52 : vector<4x8xf32>
    %59 = arith.mulf %57, %58 : vector<4x8xf32>
    %cst_16 = arith.constant dense<0.000000e+00> : vector<4xf32>
    %60 = vector.multi_reduction <add>, %59, %cst_16 [1] : vector<4x8xf32> to vector<4xf32>
    %61 = vector.shape_cast %60 : vector<4xf32> to vector<4x1xf32>
    %cst_17 = arith.constant dense<0.000000e+00> : vector<1xf32>
    %62 = vector.multi_reduction <add>, %61, %cst_17 [0] : vector<4x1xf32> to vector<1xf32>
    %63 = vector.shape_cast %62 : vector<1xf32> to vector<1x1xf32>
    %cst_18 = arith.constant 2.500000e-01 : f32
    %64 = vector.broadcast %cst_18 : f32 to vector<1x1xf32>
    %65 = arith.mulf %63, %64 : vector<1x1xf32>
    %c0_19 = arith.constant 0 : index
    %c0_20 = arith.constant 0 : index
    %66 = vector.load %arg1[%c0_19, %c0_20] : memref<8x32xf32, #tpu.memory_space<vmem>>, vector<8x32xf32>
    %67 = arith.mulf %66, %66 : vector<8x32xf32>
    %cst_21 = arith.constant dense<0.000000e+00> : vector<8xf32>
    %68 = vector.multi_reduction <add>, %67, %cst_21 [1] : vector<8x32xf32> to vector<8xf32>
    %69 = vector.shape_cast %68 : vector<8xf32> to vector<8x1xf32>
    %cst_22 = arith.constant 9.99999996E-13 : f32
    %70 = vector.broadcast %cst_22 : f32 to vector<8x1xf32>
    %71 = arith.addf %69, %70 : vector<8x1xf32>
    %72 = math.rsqrt %71 : vector<8x1xf32>
    %73 = vector.broadcast %72 : vector<8x1xf32> to vector<8x32xf32>
    %74 = arith.mulf %66, %73 : vector<8x32xf32>
    %cst_23 = arith.constant dense<0.000000e+00> : vector<8x8xf32>
    %75 = tpu.matmul %74, %74, %cst_23 {dimension_numbers = #tpu.dot_dimension_numbers<[1], [1], [0], [0], [0, 0, 1, 0], [], []>} : vector<8x32xf32>, vector<8x32xf32>, vector<8x8xf32> -> vector<8x8xf32>
    %76 = vector.broadcast %5 : vector<8x1xi32> to vector<8x8xi32>
    %77 = vector.broadcast %8 : vector<1x8xi32> to vector<8x8xi32>
    %78 = arith.cmpi eq, %76, %77 : vector<8x8xi32>
    %cst_24 = arith.constant 0x7F800000 : f32
    %79 = vector.broadcast %cst_24 : f32 to vector<8x8xf32>
    %80 = arith.select %78, %75, %79 : vector<8x8xi1>, vector<8x8xf32>
    %cst_25 = arith.constant dense<0x7F800000> : vector<8xf32>
    %81 = vector.multi_reduction <minimumf>, %80, %cst_25 [1] : vector<8x8xf32> to vector<8xf32>
    %82 = vector.shape_cast %81 : vector<8xf32> to vector<8x1xf32>
    %cst_26 = arith.constant 0xFF800000 : f32
    %83 = vector.broadcast %cst_26 : f32 to vector<8x8xf32>
    %84 = arith.select %78, %83, %75 : vector<8x8xi1>, vector<8x8xf32>
    %cst_27 = arith.constant dense<0xFF800000> : vector<8xf32>
    %85 = vector.multi_reduction <maximumf>, %84, %cst_27 [1] : vector<8x8xf32> to vector<8xf32>
    %86 = vector.shape_cast %85 : vector<8xf32> to vector<8x1xf32>
    %cst_28 = arith.constant 2.000000e+00 : f32
    %87 = vector.broadcast %cst_28 : f32 to vector<8x1xf32>
    %88 = arith.mulf %87, %82 : vector<8x1xf32>
    %cst_29 = arith.constant 2.000000e+00 : f32
    %89 = vector.broadcast %cst_29 : f32 to vector<8x1xf32>
    %90 = arith.subf %89, %88 : vector<8x1xf32>
    %cst_30 = arith.constant 9.99999996E-13 : f32
    %91 = vector.broadcast %cst_30 : f32 to vector<8x1xf32>
    %92 = arith.maximumf %90, %91 : vector<8x1xf32>
    %93 = math.sqrt %92 : vector<8x1xf32>
    %cst_31 = arith.constant 2.000000e+00 : f32
    %94 = vector.broadcast %cst_31 : f32 to vector<8x1xf32>
    %95 = arith.mulf %94, %86 : vector<8x1xf32>
    %cst_32 = arith.constant 2.000000e+00 : f32
    %96 = vector.broadcast %cst_32 : f32 to vector<8x1xf32>
    %97 = arith.subf %96, %95 : vector<8x1xf32>
    %cst_33 = arith.constant 9.99999996E-13 : f32
    %98 = vector.broadcast %cst_33 : f32 to vector<8x1xf32>
    %99 = arith.maximumf %97, %98 : vector<8x1xf32>
    %100 = math.sqrt %99 : vector<8x1xf32>
    %101 = arith.subf %93, %100 : vector<8x1xf32>
    %cst_34 = arith.constant 3.000000e-01 : f32
    %102 = vector.broadcast %cst_34 : f32 to vector<8x1xf32>
    %103 = arith.addf %101, %102 : vector<8x1xf32>
    %cst_35 = arith.constant 0.000000e+00 : f32
    %104 = vector.broadcast %cst_35 : f32 to vector<8x1xf32>
    %105 = arith.maximumf %103, %104 : vector<8x1xf32>
    %cst_36 = arith.constant dense<0.000000e+00> : vector<1xf32>
    %106 = vector.multi_reduction <add>, %105, %cst_36 [0] : vector<8x1xf32> to vector<1xf32>
    %107 = vector.shape_cast %106 : vector<1xf32> to vector<1x1xf32>
    %cst_37 = arith.constant 1.250000e-01 : f32
    %108 = vector.broadcast %cst_37 : f32 to vector<1x1xf32>
    %109 = arith.mulf %107, %108 : vector<1x1xf32>
    %110 = tpu.iota {dimensions = array<i32: 1>} : vector<1x128xi32>
    %c0_i32 = arith.constant 0 : i32
    %111 = vector.broadcast %c0_i32 : i32 to vector<1x128xi32>
    %112 = arith.cmpi eq, %110, %111 : vector<1x128xi32>
    %c1_i32 = arith.constant 1 : i32
    %113 = vector.broadcast %c1_i32 : i32 to vector<1x128xi32>
    %114 = arith.cmpi eq, %110, %113 : vector<1x128xi32>
    %c2_i32 = arith.constant 2 : i32
    %115 = vector.broadcast %c2_i32 : i32 to vector<1x128xi32>
    %116 = arith.cmpi eq, %110, %115 : vector<1x128xi32>
    %cst_38 = arith.constant 0.000000e+00 : f32
    %117 = vector.shape_cast %109 : vector<1x1xf32> to vector<1x1xf32>
    %118 = vector.broadcast %117 : vector<1x1xf32> to vector<1x128xf32>
    %119 = vector.broadcast %cst_38 : f32 to vector<1x128xf32>
    %120 = arith.select %116, %118, %119 : vector<1x128xi1>, vector<1x128xf32>
    %121 = vector.shape_cast %65 : vector<1x1xf32> to vector<1x1xf32>
    %122 = vector.broadcast %121 : vector<1x1xf32> to vector<1x128xf32>
    %123 = arith.select %114, %122, %120 : vector<1x128xi1>, vector<1x128xf32>
    %124 = vector.shape_cast %50 : vector<1x1xf32> to vector<1x1xf32>
    %125 = vector.broadcast %124 : vector<1x1xf32> to vector<1x128xf32>
    %126 = arith.select %112, %125, %123 : vector<1x128xi1>, vector<1x128xf32>
    %c0_39 = arith.constant 0 : index
    %c0_40 = arith.constant 0 : index
    %127 = vector.load %arg4[%c0_39, %c0_40] : memref<1x128xf32, #tpu.memory_space<vmem>>, vector<1x128xf32>
    tpu.vector_store %arg4[%c0_39, %c0_40], %126 {strides = array<i32>} : memref<1x128xf32, #tpu.memory_space<vmem>>, vector<1x128xf32>,
    return
  }
}

</mosaic_0001>

<llo_original>
// kernel: fused_losses.1
$region0: #{fused_losses.1}
  #allocation0 [shape = 'u32[]', space=smem, size = 0x4, offset = 0x4, fixed_abs, tag = 'smem constant byte address 0x4 - core index']
  #allocation1 [shape = 'u32[72,128]{1,0:T(1,128)}', space=vmem, size = 0x9000, scoped, tag = 'internal scratch']
  %s0 = inlined_call_operand.vmem [shape: f32[2,4,8], index: 0, kind: input, shape index: {}]
  %s1 = inlined_call_operand.vmem [shape: f32[8,32], index: 1, kind: input, shape index: {}]
  %s2 = inlined_call_operand.vmem [shape: s32[8,2], index: 2, kind: input, shape index: {}]
  %s3 = inlined_call_operand.vmem [shape: s32[1,8], index: 3, kind: input, shape index: {}]
  %s4 = inlined_call_operand.vmem [shape: f32[1,128], index: 4, kind: output, shape index: {}]
  %s5 = sld [smem:[#allocation0]]
  $region26: #{fused_losses.1} parent=0
    _
  %s7 = ssub.s32 1, %s5
  %s8 = scalar_select 0, %s7, %s5
  // Predicated region
  $region2: #{fused_losses.1} parent=0 // pred_check
    _
  $region3: #{fused_losses.1} parent=0 // pred_check_branch
    %10 = sbr.rel (0) target = $region5
  $region4: #{fused_losses.1} parent=0 // pred_region
    _
  $region5: #{fused_losses.1} parent=0 // pred_fallthru
    _
  // Predicated region
  $region6: #{fused_losses.1} parent=0 // pred_check
    _
  $region7: #{fused_losses.1} parent=0 // pred_check_branch
    %12 = sbr.rel (0) target = $region9
  $region8: #{fused_losses.1} parent=0 // pred_region
    _
  $region9: #{fused_losses.1} parent=0 // pred_fallthru
    _
  // Predicated region
  $region10: #{fused_losses.1} parent=0 // pred_check
    _
  $region11: #{fused_losses.1} parent=0 // pred_check_branch
    %14 = sbr.rel (0) target = $region13
  $region12: #{fused_losses.1} parent=0 // pred_region
    _
  $region13: #{fused_losses.1} parent=0 // pred_fallthru
    _
  // Predicated region
  $region14: #{fused_losses.1} parent=0 // pred_check
    _
  $region15: #{fused_losses.1} parent=0 // pred_check_branch
    %16 = sbr.rel (0) target = $region17
  $region16: #{fused_losses.1} parent=0 // pred_region
    _
  $region17: #{fused_losses.1} parent=0 // pred_fallthru
    _
  %v17 = vld [vmem:[%s0] sm:$0xf]
  %s18 = scalar_lea.vmem %s0, 4
  %v19 = vld [vmem:[%s18] sm:$0xf]
  %v20 = vld [vmem:[%s2] sm:$0xff]
  %v21 = vld [vmem:[%s3] sm:$0x1]
  %v22 = vlaneseq
  %v23 = vand.u32 %v22, 127
  %24 = vset.pattern.permute.xlu0 0
  %25 = vperm.xlu0 %24, %v20
  %v26 = vpop.permute.xlu0 %25
  %vm27 = vcmp.eq.s32.totalorder %v26, %v23
  %v28 = vsel %vm27, 1, 0
  %v29 = vcvt.s32.f32 %v28
  %30 = vset.pattern.permute.xlu0 1
  %31 = vperm.xlu0 %30, %v20
  %v32 = vpop.permute.xlu0 %31
  %vm33 = vcmp.eq.s32.totalorder %v32, %v23
  %v34 = vsel %vm33, 1, 0
  %v35 = vcvt.s32.f32 %v34
  %vm36 = vcmask 60416
  %v37 = vsel %vm36, %v17, -inf
  %38 = vmax.xlane.f32.xlu0 %v37
  %v39 = vpop.xlane.xlu0 %38
  %v40 = vsel %vm36, %v19, -inf
  %41 = vmax.xlane.f32.xlu0 %v40
  %v42 = vpop.xlane.xlu0 %41
  %v43 = vsub.f32 %v17, %v39
  %v44 = vmul.f32 %v43, 1.442695
  %v45 = vpow.pop %v44
  %v46 = vsub.f32 %v19, %v42
  %v47 = vmul.f32 %v46, 1.442695
  %v48 = vpow.pop %v47
  %v49 = vsel %vm36, %v45, 0.0
  %50 = vadd.xlane.f32.xlu0 %v49
  %v51 = vpop.xlane.xlu0 %50
  %v52 = vsel %vm36, %v48, 0.0
  %53 = vadd.xlane.f32.xlu0 %v52
  %v54 = vpop.xlane.xlu0 %53
  %v55 = vlog2.pop %v51
  %v56 = vmul.f32 %v55, 0.6931472
  %v57 = vadd.f32 %v39, %v56
  %v58 = vlog2.pop %v54
  %v59 = vmul.f32 %v58, 0.6931472
  %v60 = vadd.f32 %v42, %v59
  %v61 = vmul.f32 %v29, %v17
  %v62 = vsel %vm36, %v61, 0.0
  %63 = vadd.xlane.f32.xlu0 %v62
  %v64 = vpop.xlane.xlu0 %63
  %v65 = vmul.f32 %v35, %v19
  %v66 = vsel %vm36, %v65, 0.0
  %67 = vadd.xlane.f32.xlu0 %v66
  %v68 = vpop.xlane.xlu0 %67
  %v69 = vsub.f32 %v57, %v64
  %vm70 = vcmask 1043456
  %v71 = vsel %vm70, %v69, 0.0
  %v72 = vrot.slane %v71, 4
  %v73 = vadd.f32 %v71, %v72
  %v74 = vrot.slane %v73, 2
  %v75 = vadd.f32 %v73, %v74
  %v76 = vrot.slane %v75, 1
  %v77 = vadd.f32 %v75, %v76
  %v78 = vsub.f32 %v60, %v68
  %v79 = vsel %vm70, %v78, 0.0
  %v80 = vrot.slane %v79, 4
  %v81 = vadd.f32 %v79, %v80
  %v82 = vrot.slane %v81, 2
  %v83 = vadd.f32 %v81, %v82
  %v84 = vrot.slane %v83, 1
  %v85 = vadd.f32 %v83, %v84
  %v86 = vadd.f32 %v77, %v85
  %v87 = vmul.f32 %v86, 0.25
  %v88 = vsub.f32 %v17, %v57
  %v89 = vsub.f32 %v19, %v60
  %v90 = vrcp.pop %v54
  %v91 = vmul.f32 %v48, %v90
  %v92 = vsub.f32 %v89, %v88
  %v93 = vmul.f32 %v91, %v92
  %v94 = vsel %vm36, %v93, 0.0
  %95 = vadd.xlane.f32.xlu0 %v94
  %v96 = vpop.xlane.xlu0 %95
  %v97 = vsel %vm70, %v96, 0.0
  %v98 = vrot.slane %v97, 4
  %v99 = vadd.f32 %v97, %v98
  %v100 = vrot.slane %v99, 2
  %v101 = vadd.f32 %v99, %v100
  %v102 = vrot.slane %v101, 1
  %v103 = vadd.f32 %v101, %v102
  %v104 = vmul.f32 %v103, 0.25
  %v105 = vld [vmem:[%s1] sm:$0xff]
  %v106 = vmul.f32 %v105, %v105
  %vm107 = vcmask 261120
  %v108 = vsel %vm107, %v106, 0.0
  %109 = vadd.xlane.f32.xlu0 %v108
  %v110 = vpop.xlane.xlu0 %109
  %v111 = vadd.f32 %v110, 1e-12
  %v112 = vrsqrt.pop %v111
  %v113 = vmul.f32 %v112, %v111
  %v114 = vmul.f32 %v113, %v112
  %v115 = vmul.f32 0.5, %v114
  %v116 = vsub.f32 1.5, %v115
  %v117 = vmul.f32 %v112, %v116
  %vm118 = vweird.f32 %v111
  %vm119 = vweird.f32 %v112
  %vm120 = vmor %vm118, %vm119
  %v121 = vsel %vm120, %v112, %v117
  %v122 = vmul.f32 %v105, %v121
  %v124 = vsel %vm107, %v122, 0
  %126 = vmatpush.xpose.msra.mxu0 0.0
  %127 = vmatpush.xpose.msra.mxu0 0.0
  %128 = vmatpush.xpose.msra.mxu0 0.0
  %129 = vmatpush.xpose.msra.mxu0 0.0
  %130 = vmatpush.xpose.msra.mxu0 0.0
  %131 = vmatpush.xpose.msra.mxu0 0.0
  %132 = vmatpush.xpose.msra.mxu0 0.0
  %133 = vmatpush.xpose.msra.mxu0 0.0
  %134 = vmatpush.xpose.msra.mxu0 0.0
  %135 = vmatpush.xpose.msra.mxu0 0.0
  %136 = vmatpush.xpose.msra.mxu0 0.0
  %137 = vmatpush.xpose.msra.mxu0 0.0
  %138 = vmatpush.xpose.msra.mxu0 0.0
  %139 = vmatpush.xpose.msra.mxu0 0.0
  %140 = vmatpush.xpose.msra.mxu0 0.0
  %141 = vmatpush.xpose.msra.mxu0 %v124
  %142 = vmatmul.f32.gmra.mxu0 %v124
  %v143 = vpop.f32.mrf.mxu0
  %v144 = vadd.f32 0.0, %v143
  %145 = vdwg.mxu0
  %v146 = vperm.slane %v21, 0
  %vm147 = vcmp.eq.s32.totalorder %v26, %v146
  %v148 = vsel %vm147, %v144, inf
  %vm149 = vcmask 64512
  %v150 = vsel %vm149, %v148, inf
  %151 = vmin.xlane.f32.xlu0 %v150
  %v152 = vpop.xlane.xlu0 %151
  %v153 = vsel %vm147, -inf, %v144
  %v154 = vsel %vm149, %v153, -inf
  %155 = vmax.xlane.f32.xlu0 %v154
  %v156 = vpop.xlane.xlu0 %155
  %v157 = vmul.f32 %v152, 2.0
  %v158 = vsub.f32 2.0, %v157
  %v159 = vmax.f32 %v158, 1e-12
  %v160 = vrsqrt.pop %v159
  %v161 = vmul.f32 %v160, %v159
  %v162 = vmul.f32 %v161, %v160
  %v163 = vmul.f32 0.5, %v162
  %v164 = vsub.f32 1.5, %v163
  %v165 = vmul.f32 %v160, %v164
  %v166 = vmul.f32 %v159, %v165
  %vm167 = vcmp.eq.f32.partialorder %v159, inf
  %v168 = vsel %vm167, %v159, %v166
  %vm169 = vcmp.eq.f32.partialorder %v159, 0.0
  %v170 = vand.u32 %v159, 2147483648
  %v171 = vsel %vm169, %v170, %v168
  %v172 = vmul.f32 %v156, 2.0
  %v173 = vsub.f32 2.0, %v172
  %v174 = vmax.f32 %v173, 1e-12
  %v175 = vrsqrt.pop %v174
  %v176 = vmul.f32 %v175, %v174
  %v177 = vmul.f32 %v176, %v175
  %v178 = vmul.f32 0.5, %v177
  %v179 = vsub.f32 1.5, %v178
  %v180 = vmul.f32 %v175, %v179
  %v181 = vmul.f32 %v174, %v180
  %vm182 = vcmp.eq.f32.partialorder %v174, inf
  %v183 = vsel %vm182, %v174, %v181
  %vm184 = vcmp.eq.f32.partialorder %v174, 0.0
  %v185 = vand.u32 %v174, 2147483648
  %v186 = vsel %vm184, %v185, %v183
  %v187 = vsub.f32 %v171, %v186
  %v188 = vadd.f32 %v187, 0.3
  %v189 = vmax.f32 %v188, 0.0
  %v190 = vrot.slane %v189, 4
  %v191 = vadd.f32 %v189, %v190
  %v192 = vrot.slane %v191, 2
  %v193 = vadd.f32 %v191, %v192
  %v194 = vrot.slane %v193, 1
  %v195 = vadd.f32 %v193, %v194
  %v196 = vmul.f32 %v195, 0.125
  %vm197 = vcmp.eq.s32.totalorder %v23, 0
  %vm198 = vcmp.eq.s32.totalorder %v23, 1
  %vm199 = vcmp.eq.s32.totalorder %v23, 2
  %v200 = vsel %vm199, %v196, 0.0
  %v201 = vsel %vm198, %v104, %v200
  %v202 = vsel %vm197, %v87, %v201
  %203 = vst [vmem:[%s4] sm:$0x1] %v202
  // Predicated region
  $region18: #{fused_losses.1} parent=0 // pred_check
    _
  $region19: #{fused_losses.1} parent=0 // pred_check_branch
    %205 = sbr.rel (0) target = $region21
  $region20: #{fused_losses.1} parent=0 // pred_region
    _
  $region21: #{fused_losses.1} parent=0 // pred_fallthru
    _
  // Predicated region
  $region22: #{fused_losses.1} parent=0 // pred_check
    _
  $region23: #{fused_losses.1} parent=0 // pred_check_branch
    %207 = sbr.rel (0) target = $region25
  $region24: #{fused_losses.1} parent=0 // pred_region
    _
  $region25: #{fused_losses.1} parent=0 // pred_fallthru
    _

</llo_original>
